<compile_context>
chip_gen: v5e
topology: v5e:2x2
jax: 0.10.0
libtpu: 0.0.40
codegen_flags: <defaults>
</compile_context>

<pallas_src>
import functools

import jax
import jax.numpy as jnp
from jax.experimental import pallas as pl
from jax.experimental.pallas import tpu as pltpu


def _vmem_limit_bytes():
    """Scoped-VMEM limit to request: ~3/4 of physical, capped at 100 MiB."""
    cap = None
    try:
        info = pltpu.get_tpu_info()
        cap = getattr(info, "vmem_capacity_bytes", None)
    except Exception:
        cap = None
    if not cap:
        cap = 64 * 1024 * 1024  # conservative: v7x physical VMEM per TC
    return int(min(cap * 3 // 4, 100 * 1024 * 1024))


def _num_tensorcores():
    """2 TensorCores per chip on v7x; v5e/v6e have 1 (keep it a serial no-op)."""
    try:
        kind = jax.devices()[0].device_kind.lower()
        if "v7" in kind:
            return 2
    except Exception:
        pass
    return 1


def _kl_distill_kernel(s_ref, t_ref, o_ref, *, inv_T, B, TB, tiles_per_core,
                       num_tiles, ragged, may_have_dup):
    c = pl.program_id(0)   # core ("parallel") axis
    i = pl.program_id(1)   # batch-tile ("arbitrary") reduction axis

    # Zero this core's resident accumulator block on its first tile.
    @pl.when(i == 0)
    def _():
        o_ref[...] = jnp.zeros_like(o_ref)

    logical_tile = c * tiles_per_core + i

    def body():
        # Load tile, compute in f32 (multiply by 1/T instead of dividing).
        s = s_ref[...].astype(jnp.float32) * inv_T
        t = t_ref[...].astype(jnp.float32) * inv_T

        # Shifted logits (numerically stable softmax pieces).
        s_shift = s - jnp.max(s, axis=1, keepdims=True)
        t_shift = t - jnp.max(t, axis=1, keepdims=True)

        e_t = jnp.exp(t_shift)                                    # [TB, C]
        z_t = jnp.sum(e_t, axis=1, keepdims=True)                 # [TB, 1]
        log_z_s = jnp.log(jnp.sum(jnp.exp(s_shift), axis=1, keepdims=True))

        # sum_c p_t * (log p_t - log p_s)
        #   = sum_c e_t * (t_shift - s_shift) / z_t + (log z_s - log z_t)
        num = jnp.sum(e_t * (t_shift - s_shift), axis=1, keepdims=True)
        row_kl = (num * pl.reciprocal(z_t, approx=False)
                  + (log_z_s - jnp.log(z_t)))                     # [TB, 1]

        if ragged:
            # Mask rows past B in the (single) ragged last tile.  Keep this a
            # select, not a multiply: garbage rows may have produced NaN.
            row_ids = logical_tile * TB + jax.lax.broadcasted_iota(
                jnp.int32, (TB, 1), 0)
            row_kl = jnp.where(row_ids < B, row_kl, 0.0)

        # Broadcast across the 128-lane output block so the store stays a full,
        # unmasked vector store.
        o_ref[...] += jnp.sum(row_kl)

    if may_have_dup:
        # Skip compute entirely on duplicated (index-clamped) tiles.
        pl.when(logical_tile < num_tiles)(body)
    else:
        body()


def soft_target_distill_loss(out_s, out_t, T, tb=None):
    """Pallas TPU implementation of SoftTargetDistillLoss.forward.

    out_s, out_t: [B, C] student / teacher logits (f32 or bf16).
    Returns a scalar (float32) loss.
    """
    assert out_s.shape == out_t.shape and out_s.ndim == 2
    B, C = out_s.shape
    itemsize = jnp.dtype(out_s.dtype).itemsize
    sublane = {4: 8, 2: 16, 1: 32}.get(itemsize, 8)

    vmem_limit = _vmem_limit_bytes()

    if tb is None:
        # (a) HBM roofline: ~1 MiB per input block is enough to amortize the
        #     per-step overhead; bigger only increases VMEM pressure.
        tb_block_cap = max(sublane, (1024 * 1024) // max(C * itemsize, 1))
        # (b) Total VMEM footprint per row: 2 inputs x 2 pipeline buffers in
        #     wire dtype + ~5 live f32 [TB, C] intermediates; keep it well
        #     inside the scoped limit (v7x has only 64 MiB physical VMEM).
        per_row_bytes = 4 * C * itemsize + 5 * 4 * C
        tb_vmem_cap = max(sublane, int(vmem_limit * 0.7) // per_row_bytes)
        TB = min(B, 1024, tb_block_cap, tb_vmem_cap)
    else:
        TB = min(int(tb), B)
    if TB < B:
        # Blocked (non-full) batch dim must be a sublane multiple.
        TB = max(sublane, (TB // sublane) * sublane)

    num_tiles = -(-B // TB)
    num_cores = min(_num_tensorcores(), num_tiles)
    tiles_per_core = -(-num_tiles // num_cores)
    may_have_dup = num_cores * tiles_per_core > num_tiles
    ragged = (B % TB) != 0

    kernel = functools.partial(
        _kl_distill_kernel,
        inv_T=1.0 / float(T),
        B=B,
        TB=TB,
        tiles_per_core=tiles_per_core,
        num_tiles=num_tiles,
        ragged=ragged,
        may_have_dup=may_have_dup,
    )

    if may_have_dup:
        def in_map(c, i):
            # Cores with fewer real tiles re-read (and skip) the last tile.
            return (jnp.minimum(c * tiles_per_core + i, num_tiles - 1), 0)
    else:
        def in_map(c, i):
            return (c * tiles_per_core + i, 0)

    # TODO(synk): profile on v7x and switch the leading axis to
    # pltpu.CORE_PARALLEL if plain "parallel" does not shard across the 2 TCs.
    out = pl.pallas_call(
        kernel,
        out_shape=jax.ShapeDtypeStruct((num_cores, 1, 128), jnp.float32),
        grid=(num_cores, tiles_per_core),
        in_specs=[
            pl.BlockSpec((TB, C), in_map),
            pl.BlockSpec((TB, C), in_map),
        ],
        out_specs=pl.BlockSpec((1, 1, 128), lambda c, i: (c, 0, 0)),
        compiler_params=pltpu.CompilerParams(
            dimension_semantics=("parallel", "arbitrary"),
            vmem_limit_bytes=vmem_limit,
        ),
    )(out_s, out_t)

    # Cross-core sum + batchmean + T^2 scale (tiny scalar ops).
    scale = (float(T) * float(T)) / float(B)
    return jnp.sum(out[:, 0, 0]) * scale


if __name__ == "__main__":
    key = jax.random.PRNGKey(0)
    k1, k2, k3, k4 = jax.random.split(key, 4)

    # Test 1: small, module-consistent shapes (batch=8, num_classes=32), f32.
    # C=32 also exercises the lane-padded (C % 128 != 0) reduction path.
    B, C = 8, 32
    out_s = jax.random.normal(k1, (B, C), dtype=jnp.float32)
    out_t = jax.random.normal(k2, (B, C), dtype=jnp.float32)
    T = 4.0
    loss = soft_target_distill_loss(out_s, out_t, T)
    jax.block_until_ready(loss)

    log_p_s = jax.nn.log_softmax(out_s / T, axis=1)
    log_p_t = jax.nn.log_softmax(out_t / T, axis=1)
    p_t = jnp.exp(log_p_t)
    ref = jnp.sum(p_t * (log_p_t - log_p_s)) / B * T * T
    assert jnp.allclose(loss, ref, rtol=1e-5, atol=1e-5), (loss, ref)

    # Test 2: ragged batch + multi-tile + bf16 on the wire.
    B2, C2, T2 = 100, 256, 2.0
    s2 = jax.random.normal(k3, (B2, C2), dtype=jnp.float32).astype(jnp.bfloat16)
    t2 = jax.random.normal(k4, (B2, C2), dtype=jnp.float32).astype(jnp.bfloat16)
    loss2 = soft_target_distill_loss(s2, t2, T2, tb=32)
    jax.block_until_ready(loss2)

    s2f = s2.astype(jnp.float32)
    t2f = t2.astype(jnp.float32)
    lps2 = jax.nn.log_softmax(s2f / T2, axis=1)
    lpt2 = jax.nn.log_softmax(t2f / T2, axis=1)
    pt2 = jnp.exp(lpt2)
    ref2 = jnp.sum(pt2 * (lpt2 - lps2)) / B2 * T2 * T2
    assert jnp.allclose(loss2, ref2, rtol=1e-4, atol=1e-5), (loss2, ref2)

    print("KERNEL_OK")
</pallas_src>

<mosaic_0001>
module attributes {stable_mosaic.version = 11 : i64} {
  func.func @_kl_distill_kernel(%arg0: i32, %arg1: i32, %arg2: memref<8x32xf32, #tpu.memory_space<vmem>>, %arg3: memref<8x32xf32, #tpu.memory_space<vmem>>, %arg4: memref<1x1x128xf32, #tpu.memory_space<vmem>>) attributes {dimension_semantics = [#tpu.dimension_semantics<parallel>, #tpu.dimension_semantics<arbitrary>], iteration_bounds = array<i64: 1, 1>, scalar_prefetch = 0 : i64, scratch_operands = 0 : i64, tpu.core_type = #tpu.core_type<tc>, window_params = [{transform_indices = @transform_0, window_bounds = array<i64: 8, 32>}, {transform_indices = @transform_1, window_bounds = array<i64: 8, 32>}, {transform_indices = @transform_2, window_bounds = array<i64: 1, 1, 128>}]} {
    %c0_i32 = arith.constant 0 : i32
    %0 = arith.cmpi eq, %arg1, %c0_i32 : i32
    %1 = arith.extui %0 : i1 to i32
    %c0_i32_0 = arith.constant 0 : i32
    %2 = arith.cmpi ne, %1, %c0_i32_0 : i32
    scf.if %2 {
      %cst_17 = arith.constant 0.000000e+00 : f32
      %41 = vector.broadcast %cst_17 : f32 to vector<1x1x128xf32>
      %c0_18 = arith.constant 0 : index
      %c0_19 = arith.constant 0 : index
      %c0_20 = arith.constant 0 : index
      %42 = vector.load %arg4[%c0_18, %c0_19, %c0_20] : memref<1x1x128xf32, #tpu.memory_space<vmem>>, vector<1x1x128xf32>
      tpu.vector_store %arg4[%c0_18, %c0_19, %c0_20], %41 {strides = array<i32>} : memref<1x1x128xf32, #tpu.memory_space<vmem>>, vector<1x1x128xf32>,
    } else {
    }
    %c0 = arith.constant 0 : index
    %c0_1 = arith.constant 0 : index
    %3 = vector.load %arg2[%c0, %c0_1] : memref<8x32xf32, #tpu.memory_space<vmem>>, vector<8x32xf32>
    %cst = arith.constant 2.500000e-01 : f32
    %4 = vector.broadcast %cst : f32 to vector<8x32xf32>
    %5 = arith.mulf %3, %4 : vector<8x32xf32>
    %c0_2 = arith.constant 0 : index
    %c0_3 = arith.constant 0 : index
    %6 = vector.load %arg3[%c0_2, %c0_3] : memref<8x32xf32, #tpu.memory_space<vmem>>, vector<8x32xf32>
    %cst_4 = arith.constant 2.500000e-01 : f32
    %7 = vector.broadcast %cst_4 : f32 to vector<8x32xf32>
    %8 = arith.mulf %6, %7 : vector<8x32xf32>
    %cst_5 = arith.constant dense<0xFF800000> : vector<8xf32>
    %9 = vector.multi_reduction <maximumf>, %5, %cst_5 [1] : vector<8x32xf32> to vector<8xf32>
    %10 = vector.shape_cast %9 : vector<8xf32> to vector<8x1xf32>
    %11 = vector.broadcast %10 : vector<8x1xf32> to vector<8x32xf32>
    %12 = arith.subf %5, %11 : vector<8x32xf32>
    %cst_6 = arith.constant dense<0xFF800000> : vector<8xf32>
    %13 = vector.multi_reduction <maximumf>, %8, %cst_6 [1] : vector<8x32xf32> to vector<8xf32>
    %14 = vector.shape_cast %13 : vector<8xf32> to vector<8x1xf32>
    %15 = vector.broadcast %14 : vector<8x1xf32> to vector<8x32xf32>
    %16 = arith.subf %8, %15 : vector<8x32xf32>
    %17 = math.exp %16 : vector<8x32xf32>
    %cst_7 = arith.constant dense<0.000000e+00> : vector<8xf32>
    %18 = vector.multi_reduction <add>, %17, %cst_7 [1] : vector<8x32xf32> to vector<8xf32>
    %19 = vector.shape_cast %18 : vector<8xf32> to vector<8x1xf32>
    %20 = math.exp %12 : vector<8x32xf32>
    %cst_8 = arith.constant dense<0.000000e+00> : vector<8xf32>
    %21 = vector.multi_reduction <add>, %20, %cst_8 [1] : vector<8x32xf32> to vector<8xf32>
    %22 = vector.shape_cast %21 : vector<8xf32> to vector<8x1xf32>
    %23 = math.log %22 : vector<8x1xf32>
    %24 = arith.subf %16, %12 : vector<8x32xf32>
    %25 = arith.mulf %17, %24 : vector<8x32xf32>
    %cst_9 = arith.constant dense<0.000000e+00> : vector<8xf32>
    %26 = vector.multi_reduction <add>, %25, %cst_9 [1] : vector<8x32xf32> to vector<8xf32>
    %27 = vector.shape_cast %26 : vector<8xf32> to vector<8x1xf32>
    %28 = tpu.reciprocal %19 : vector<8x1xf32> -> vector<8x1xf32>
    %29 = arith.mulf %27, %28 : vector<8x1xf32>
    %30 = math.log %19 : vector<8x1xf32>
    %31 = arith.subf %23, %30 : vector<8x1xf32>
    %32 = arith.addf %29, %31 : vector<8x1xf32>
    %c0_10 = arith.constant 0 : index
    %c0_11 = arith.constant 0 : index
    %c0_12 = arith.constant 0 : index
    %33 = vector.load %arg4[%c0_10, %c0_11, %c0_12] : memref<1x1x128xf32, #tpu.memory_space<vmem>>, vector<1x1x128xf32>
    %34 = vector.shape_cast %32 : vector<8x1xf32> to vector<1x8x1xf32>
    %cst_13 = arith.constant dense<0.000000e+00> : vector<1xf32>
    %35 = vector.multi_reduction <add>, %34, %cst_13 [1, 2] : vector<1x8x1xf32> to vector<1xf32>
    %36 = vector.shape_cast %35 : vector<1xf32> to vector<1x1x1xf32>
    %37 = vector.extract %36[0, 0, 0] : f32 from vector<1x1x1xf32>
    %38 = vector.broadcast %37 : f32 to vector<1x1x128xf32>
    %39 = arith.addf %33, %38 : vector<1x1x128xf32>
    %c0_14 = arith.constant 0 : index
    %c0_15 = arith.constant 0 : index
    %c0_16 = arith.constant 0 : index
    %40 = vector.load %arg4[%c0_14, %c0_15, %c0_16] : memref<1x1x128xf32, #tpu.memory_space<vmem>>, vector<1x1x128xf32>
    tpu.vector_store %arg4[%c0_14, %c0_15, %c0_16], %39 {strides = array<i32>} : memref<1x1x128xf32, #tpu.memory_space<vmem>>, vector<1x1x128xf32>,
    return
  }
  func.func @transform_0(%arg0: i32, %arg1: i32) -> (i32, i32) {
    %c1_i32 = arith.constant 1 : i32
    %0 = arith.muli %arg0, %c1_i32 : i32
    %1 = arith.addi %0, %arg1 : i32
    %c0_i32 = arith.constant 0 : i32
    %c0_i32_0 = arith.constant 0 : i32
    return %1, %c0_i32 : i32, i32
  }
  func.func @transform_1(%arg0: i32, %arg1: i32) -> (i32, i32) {
    %c1_i32 = arith.constant 1 : i32
    %0 = arith.muli %arg0, %c1_i32 : i32
    %1 = arith.addi %0, %arg1 : i32
    %c0_i32 = arith.constant 0 : i32
    %c0_i32_0 = arith.constant 0 : i32
    return %1, %c0_i32 : i32, i32
  }
  func.func @transform_2(%arg0: i32, %arg1: i32) -> (i32, i32, i32) {
    %c0_i32 = arith.constant 0 : i32
    %c0_i32_0 = arith.constant 0 : i32
    %c0_i32_1 = arith.constant 0 : i32
    return %arg0, %c0_i32, %c0_i32_0 : i32, i32, i32
  }
}

</mosaic_0001>

<llo_original>
// kernel: tpu_custom_call.1
$region0: #{tpu_custom_call.1}
  #allocation0 [shape = 'u32[]', space=smem, size = 0x4, offset = 0x4, fixed_abs, tag = 'smem constant byte address 0x4 - core index']
  #allocation1 [shape = 'u32[72,128]{1,0:T(1,128)}', space=vmem, size = 0x9000, scoped, tag = 'internal scratch']
  %s0 = inlined_call_operand.hbm [shape: f32[8,32], index: 0, kind: input, shape index: {}]
  %s1 = inlined_call_operand.hbm [shape: f32[8,32], index: 1, kind: input, shape index: {}]
  %s2 = inlined_call_operand.hbm [shape: f32[1,1,128], index: 2, kind: output, shape index: {}]
  %s3 = sld [smem:[#allocation0]]
  $region30: #{tpu_custom_call.1} parent=0
    _
  %s5 = ssub.s32 1, %s3
  %s6 = scalar_select 0, %s5, %s3
  $region1: #{tpu_custom_call.1} parent=0
    #allocation2 [shape = 'u8[4096]{0}', space=vmem, size = 0x1000, scoped, tag = 'input window, operand 0, single buffered']
    #allocation3 [shape = 's32[1]{0}', space=sflag, size = 0x4, scoped, tag = 'scoped memory for tpu_custom_call.1']
    #allocation4 [shape = 's32[1]{0}', space=sflag, size = 0x4, scoped, tag = 'scoped memory for tpu_custom_call.1']
    #allocation5 [shape = 'u8[4096]{0}', space=vmem, size = 0x1000, scoped, tag = 'input window, operand 1, single buffered']
    #allocation6 [shape = 's32[1]{0}', space=sflag, size = 0x4, scoped, tag = 'scoped memory for tpu_custom_call.1']
    #allocation7 [shape = 'u8[512]{0}', space=vmem, size = 0x400, scoped, tag = 'output window, operand 0, single buffered']
    %7 = vsyncpa [#allocation3], 0
    %8 = vsyncpa [#allocation6], 0
    %9 = vsyncpa [#allocation4], 0
    // Predicated region
    $region2: #{tpu_custom_call.1} parent=1 // pred_check
      _
    $region3: #{tpu_custom_call.1} parent=1 // pred_check_branch
      %11 = sbr.rel (0) target = $region5
    $region4: #{tpu_custom_call.1} parent=1 // pred_region
      %s12 = sadd.s32 0, 0
      %14 = vsyncadd [#allocation3], 0
      %s15 = smul.addr %s12, 8
      %s16 = scalar_lea.hbm %s0, %s15
      %s18 = sshll.u32 %s16, 4
      %s19 = int_to_ptr.hbm [resolvable:$true] %s18
      %s20 = sshll.u32 [#allocation2], 4
      %s21 = int_to_ptr.vmem [resolvable:$true] %s20
      %23 = dma.hbm_to_vmem [thread:$0]  %s19, 128, %s21, [#allocation3]
    $region5: #{tpu_custom_call.1} parent=1 // pred_fallthru
      _
    // Predicated region
    $region6: #{tpu_custom_call.1} parent=1 // pred_check
      _
    $region7: #{tpu_custom_call.1} parent=1 // pred_check_branch
      %25 = sbr.rel (0) target = $region9
    $region8: #{tpu_custom_call.1} parent=1 // pred_region
      %s26 = sadd.s32 0, 0
      %28 = vsyncadd [#allocation6], 0
      %s29 = smul.addr %s26, 8
      %s30 = scalar_lea.hbm %s1, %s29
      %s32 = sshll.u32 %s30, 4
      %s33 = int_to_ptr.hbm [resolvable:$true] %s32
      %s34 = sshll.u32 [#allocation5], 4
      %s35 = int_to_ptr.vmem [resolvable:$true] %s34
      %37 = dma.hbm_to_vmem [thread:$0]  %s33, 128, %s35, [#allocation6]
    $region9: #{tpu_custom_call.1} parent=1 // pred_fallthru
      _
    // Predicated region
    $region10: #{tpu_custom_call.1} parent=1 // pred_check
      _
    $region11: #{tpu_custom_call.1} parent=1 // pred_check_branch
      %39 = sbr.rel (0) target = $region13
    $region12: #{tpu_custom_call.1} parent=1 // pred_region
      %41 = dma.done [#allocation3], 128
    $region13: #{tpu_custom_call.1} parent=1 // pred_fallthru
      _
    // Predicated region
    $region14: #{tpu_custom_call.1} parent=1 // pred_check
      _
    $region15: #{tpu_custom_call.1} parent=1 // pred_check_branch
      %43 = sbr.rel (0) target = $region17
    $region16: #{tpu_custom_call.1} parent=1 // pred_region
      %45 = dma.done [#allocation6], 128
    $region17: #{tpu_custom_call.1} parent=1 // pred_fallthru
      _
    %s46 = sadd.s32 0, 0
    %s47 = sadd.s32 0, 0
    %p48 = scmp.eq.s32.totalorder 0, 0
    // Predicated region
    $region18: #{tpu_custom_call.1} parent=1 // pred_check
      %p49 = pneg %p48
    $region19: #{tpu_custom_call.1} parent=1 // pred_check_branch
      %51 = sbr.rel (%p49) target = $region21
    $region20: #{tpu_custom_call.1} parent=1 // pred_region
      %52 = vst [vmem:[#allocation7] sm:$0x1] 0.0
    $region21: #{tpu_custom_call.1} parent=1 // pred_fallthru
      _
    %v53 = vld [vmem:[#allocation2] sm:$0xff]
    %v54 = vmul.f32 %v53, 0.25
    %v55 = vld [vmem:[#allocation5] sm:$0xff]
    %v56 = vmul.f32 %v55, 0.25
    %vm57 = vcmask 261120
    %v58 = vsel %vm57, %v54, -inf
    %59 = vmax.xlane.f32.xlu0 %v58
    %v60 = vpop.xlane.xlu0 %59
    %v61 = vsub.f32 %v54, %v60
    %v62 = vsel %vm57, %v56, -inf
    %63 = vmax.xlane.f32.xlu0 %v62
    %v64 = vpop.xlane.xlu0 %63
    %v65 = vsub.f32 %v56, %v64
    %v66 = vmul.f32 %v65, 1.442695
    %v67 = vpow.pop %v66
    %v68 = vsel %vm57, %v67, 0.0
    %69 = vadd.xlane.f32.xlu0 %v68
    %v70 = vpop.xlane.xlu0 %69
    %v71 = vmul.f32 %v61, 1.442695
    %v72 = vpow.pop %v71
    %v73 = vsel %vm57, %v72, 0.0
    %74 = vadd.xlane.f32.xlu0 %v73
    %v75 = vpop.xlane.xlu0 %74
    %v76 = vlog2.pop %v75
    %v77 = vmul.f32 %v76, 0.6931472
    %v78 = vsub.f32 %v65, %v61
    %v79 = vmul.f32 %v67, %v78
    %v80 = vsel %vm57, %v79, 0.0
    %81 = vadd.xlane.f32.xlu0 %v80
    %v82 = vpop.xlane.xlu0 %81
    %v83 = vrcp.pop %v70
    %v84 = vmul.f32 %v70, %v83
    %v85 = vsub.f32 1.0, %v84
    %v86 = vmul.f32 %v83, %v85
    %v87 = vadd.f32 %v83, %v86
    %vm88 = vweird.f32 %v70
    %vm89 = vweird.f32 %v83
    %vm90 = vmor %vm88, %vm89
    %v91 = vsel %vm90, %v83, %v87
    %v92 = vand.u32 2147483647, %v70
    %vm93 = vcmp.eq.f32.partialorder %v92, 8.507059e+37
    %v94 = vand.u32 %v70, 2147483648
    %v95 = vor.u32 1.1754944e-38, %v94
    %v96 = vsel %vm93, %v95, %v91
    %v97 = vmul.f32 %v82, %v96
    %v98 = vlog2.pop %v70
    %v99 = vmul.f32 %v98, 0.6931472
    %v100 = vsub.f32 %v77, %v99
    %v101 = vadd.f32 %v97, %v100
    %v102 = vld [vmem:[#allocation7] sm:$0x1]
    %vm103 = vcmask 7168
    %v104 = vsel %vm103, %v101, 0.0
    %105 = vadd.xlane.f32.xlu0 %v104
    %v106 = vpop.xlane.xlu0 %105
    %v107 = vrot.slane %v106, 4
    %v108 = vadd.f32 %v106, %v107
    %v109 = vrot.slane %v108, 2
    %v110 = vadd.f32 %v108, %v109
    %v111 = vrot.slane %v110, 1
    %v112 = vadd.f32 %v110, %v111
    %s113 = vtos %v112
    %v114 = vstv %s113
    %v115 = vadd.f32 %v102, %v114
    %116 = vst [vmem:[#allocation7] sm:$0x1] %v115
    // Predicated region
    $region22: #{tpu_custom_call.1} parent=1 // pred_check
      _
    $region23: #{tpu_custom_call.1} parent=1 // pred_check_branch
      %118 = sbr.rel (0) target = $region25
    $region24: #{tpu_custom_call.1} parent=1 // pred_region
      %120 = vsyncadd [#allocation4], 0
      %s122 = sshll.u32 [#allocation7], 4
      %s123 = int_to_ptr.vmem [resolvable:$true] %s122
      %s124 = sshll.u32 %s2, 4
      %s125 = int_to_ptr.hbm [resolvable:$true] %s124
      %127 = dma.vmem_to_hbm [thread:$0]  %s123, 16, %s125, [#allocation4]
    $region25: #{tpu_custom_call.1} parent=1 // pred_fallthru
      _
    // Predicated region
    $region26: #{tpu_custom_call.1} parent=1 // pred_check
      _
    $region27: #{tpu_custom_call.1} parent=1 // pred_check_branch
      %129 = sbr.rel (0) target = $region29
    $region28: #{tpu_custom_call.1} parent=1 // pred_region
      %131 = dma.done [#allocation4], 16
    $region29: #{tpu_custom_call.1} parent=1 // pred_fallthru
      _
    %132 = vsyncpa [#allocation3], 1
    %133 = vsyncpa [#allocation6], 1
    %134 = vsyncpa [#allocation4], 1

</llo_original>
